<compile_context>
chip_gen: v6e
topology: v6e:2x2x1
jax: 0.10.0
libtpu: 0.0.40
codegen_flags: <defaults>
</compile_context>

<pallas_src>
import functools

import jax
import jax.numpy as jnp
from jax.experimental import pallas as pl
from jax.experimental.pallas import tpu as pltpu

_LANES = 128
# (2048, 128) f32 = 1 MiB per input per pipeline buffer; with 2 inputs x 2
# pipeline buffers that is 4 MiB of VMEM -- comfortably inside the default
# scoped VMEM of every TPU generation while amortising per-step overhead.
_BLOCK_ROWS_MAX = 2048


def _round_up(v, m):
    return ((v + m - 1) // m) * m


def _choose_block_rows(rows):
    """Pick a sublane-aligned row-tile size.

    Aims for >= 2 roughly equal grid steps (so the "parallel" grid axis can
    shard across both v7x TensorCores) while capping each block at
    _BLOCK_ROWS_MAX rows (1 MiB per input per pipeline buffer).
    """
    if rows <= 8:
        return rows                        # single full-array block
    half = _round_up(pl.cdiv(rows, 2), 8)  # two balanced blocks if possible
    return min(_BLOCK_ROWS_MAX, half)


def _netx_kernel(x_ref, y_ref, out_ref, *, valid_rows_last, need_mask):
    """Writes the lane-dense (1, 1, 128) partial sum of sigmoid(x) * y."""

    def partial_sum(valid_rows):
        gated = jax.nn.sigmoid(x_ref[...]) * y_ref[...]
        if valid_rows is not None:
            # Mask rows of the overhanging last block that lie past the end
            # of the (rows, 128) arrays: their contents are unspecified.
            row = jax.lax.broadcasted_iota(jnp.int32, gated.shape, 0)
            gated = jnp.where(row < valid_rows, gated, 0.0)
        # Lane-dense partial: cheap cross-sublane reduce + unmasked store.
        return jnp.sum(gated, axis=0, keepdims=True)[None]

    if not need_mask:
        out_ref[...] = partial_sum(None)
    else:
        is_last = pl.program_id(0) == pl.num_programs(0) - 1

        @pl.when(jnp.logical_not(is_last))
        def _():
            out_ref[...] = partial_sum(None)

        @pl.when(is_last)
        def _():
            out_ref[...] = partial_sum(valid_rows_last)


def prepare_net_x_param(x):
    """One-time (init-time) tiling of the parameter vector.

    Pads to a multiple of 128 lanes and reshapes to (rows, 128).  Hoisted out
    of the forward path so no per-call work is done on the parameter.
    """
    x = x.astype(jnp.float32)
    n = x.shape[0]
    pad = (-n) % _LANES
    if pad:
        x = jnp.pad(x, (0, pad))
    return x.reshape((n + pad) // _LANES, _LANES)


def net_x_forward(x_tiled, y):
    """Computes mean(sigmoid(x) * y) with a tiled, pipelined Pallas reduction.

    x_tiled: (rows, 128) f32 parameter tiles from prepare_net_x_param.
    y:       (N,) input with N <= rows * 128.
    """
    n = y.shape[0]
    rows = x_tiled.shape[0]
    pad = rows * _LANES - n

    y = y.astype(jnp.float32)
    if pad:
        # Zero padding is safe: sigmoid(0) * 0 == 0.
        # TODO(synk): for N % 128 != 0 this pad is one extra HBM pass over y;
        # a rank-1 BlockSpec on the unpadded y would avoid it but relies on
        # rank-1 iota/reshape support in Mosaic.  N % 128 == 0 is zero-copy.
        y = jnp.pad(y, (0, pad))
    y_tiled = y.reshape(rows, _LANES)   # free (bitcast) when pad == 0

    block_rows = _choose_block_rows(rows)
    num_blocks = pl.cdiv(rows, block_rows)
    rem = rows % block_rows
    need_mask = rem != 0
    valid_rows_last = rem if need_mask else block_rows

    kernel = functools.partial(
        _netx_kernel,
        valid_rows_last=valid_rows_last,
        need_mask=need_mask,
    )

    elems = rows * _LANES
    cost = pl.CostEstimate(
        flops=4 * elems,
        transcendentals=elems,
        bytes_accessed=2 * 4 * elems + 4 * num_blocks * _LANES,
    )

    partials = pl.pallas_call(
        kernel,
        out_shape=jax.ShapeDtypeStruct((num_blocks, 1, _LANES), jnp.float32),
        grid=(num_blocks,),
        in_specs=[
            pl.BlockSpec((block_rows, _LANES), lambda i: (i, 0)),
            pl.BlockSpec((block_rows, _LANES), lambda i: (i, 0)),
        ],
        out_specs=pl.BlockSpec((1, 1, _LANES), lambda i: (i, 0, 0)),
        compiler_params=pltpu.CompilerParams(
            dimension_semantics=("parallel",),  # megacore-shardable on v7x
        ),
        cost_estimate=cost,
    )(x_tiled, y_tiled)

    # Combine tiny lane-dense per-block partials and apply the mean scale.
    return jnp.sum(partials) * (1.0 / n)


if __name__ == "__main__":
    key = jax.random.PRNGKey(0)

    # Three sizes exercising all code paths:
    #   200    -> N % 128 != 0, single full-array block (pad, no overhang mask)
    #   32768  -> N % 128 == 0, zero-copy reshape, two balanced blocks
    #   70000  -> N % 128 != 0, two blocks with a masked overhanging tail
    for n in (200, 32_768, 70_000):
        # Deterministic parameter init, exactly as in the module: torch.zeros(N)
        x_param = jnp.zeros((n,), dtype=jnp.float32)

        key, sub = jax.random.split(key)
        y_in = jax.random.normal(sub, (n,), dtype=jnp.float32)

        x_tiled = prepare_net_x_param(x_param)  # hoisted out of the forward
        result = jax.block_until_ready(net_x_forward(x_tiled, y_in))

        # Reference check (plain JAX)
        ref = jnp.mean(jax.nn.sigmoid(x_param) * y_in)
        assert jnp.allclose(result, ref, atol=1e-6, rtol=1e-4), (n, result, ref)

    print("KERNEL_OK")
</pallas_src>

<mosaic_0001>
module attributes {stable_mosaic.version = 11 : i64} {
  func.func @_netx_kernel(%arg0: i32, %arg1: memref<2x128xf32, #tpu.memory_space<vmem>>, %arg2: memref<2x128xf32, #tpu.memory_space<vmem>>, %arg3: memref<1x1x128xf32, #tpu.memory_space<vmem>>) attributes {dimension_semantics = [#tpu.dimension_semantics<parallel>], iteration_bounds = array<i64: 1>, scalar_prefetch = 0 : i64, scratch_operands = 0 : i64, tpu.core_type = #tpu.core_type<tc>, window_params = [{transform_indices = @transform_0, window_bounds = array<i64: 2, 128>}, {transform_indices = @transform_1, window_bounds = array<i64: 2, 128>}, {transform_indices = @transform_2, window_bounds = array<i64: 1, 1, 128>}]} {
    %c0 = arith.constant 0 : index
    %c0_0 = arith.constant 0 : index
    %0 = vector.load %arg1[%c0, %c0_0] : memref<2x128xf32, #tpu.memory_space<vmem>>, vector<2x128xf32>
    %1 = arith.negf %0 : vector<2x128xf32>
    %2 = math.exp %1 : vector<2x128xf32>
    %cst = arith.constant 1.000000e+00 : f32
    %3 = vector.broadcast %cst : f32 to vector<2x128xf32>
    %4 = arith.addf %3, %2 : vector<2x128xf32>
    %5 = arith.divf %3, %4 : vector<2x128xf32>
    %c0_1 = arith.constant 0 : index
    %c0_2 = arith.constant 0 : index
    %6 = vector.load %arg2[%c0_1, %c0_2] : memref<2x128xf32, #tpu.memory_space<vmem>>, vector<2x128xf32>
    %7 = arith.mulf %5, %6 : vector<2x128xf32>
    %cst_3 = arith.constant dense<0.000000e+00> : vector<128xf32>
    %8 = vector.multi_reduction <add>, %7, %cst_3 [0] : vector<2x128xf32> to vector<128xf32>
    %9 = vector.shape_cast %8 : vector<128xf32> to vector<1x128xf32>
    %10 = vector.shape_cast %9 : vector<1x128xf32> to vector<1x1x128xf32>
    %c0_4 = arith.constant 0 : index
    %c0_5 = arith.constant 0 : index
    %c0_6 = arith.constant 0 : index
    %11 = vector.load %arg3[%c0_4, %c0_5, %c0_6] : memref<1x1x128xf32, #tpu.memory_space<vmem>>, vector<1x1x128xf32>
    tpu.vector_store %arg3[%c0_4, %c0_5, %c0_6], %10 {strides = array<i32>} : memref<1x1x128xf32, #tpu.memory_space<vmem>>, vector<1x1x128xf32>,
    return
  }
  func.func @transform_0(%arg0: i32) -> (i32, i32) {
    %c0_i32 = arith.constant 0 : i32
    %c0_i32_0 = arith.constant 0 : i32
    return %arg0, %c0_i32 : i32, i32
  }
  func.func @transform_1(%arg0: i32) -> (i32, i32) {
    %c0_i32 = arith.constant 0 : i32
    %c0_i32_0 = arith.constant 0 : i32
    return %arg0, %c0_i32 : i32, i32
  }
  func.func @transform_2(%arg0: i32) -> (i32, i32, i32) {
    %c0_i32 = arith.constant 0 : i32
    %c0_i32_0 = arith.constant 0 : i32
    %c0_i32_1 = arith.constant 0 : i32
    return %arg0, %c0_i32, %c0_i32_0 : i32, i32, i32
  }
}

</mosaic_0001>

<llo_original>
// kernel: tpu_custom_call.1
$region0: #{tpu_custom_call.1}
  #allocation0 [shape = 'u32[]', space=smem, size = 0x4, offset = 0x4, fixed_abs, tag = 'smem constant byte address 0x4 - core index']
  #allocation1 [shape = 'u32[144,128]{1,0:T(1,128)}', space=vmem, size = 0x12000, scoped, tag = 'internal scratch']
  %s0 = inlined_call_operand.hbm [shape: f32[2,128], index: 0, kind: input, shape index: {}]
  %s1 = inlined_call_operand.hbm [shape: f32[2,128], index: 1, kind: input, shape index: {}]
  %s2 = inlined_call_operand.hbm [shape: f32[1,1,128], index: 2, kind: output, shape index: {}]
  %s3 = sld [smem:[#allocation0]]
  $region26: #{tpu_custom_call.1} parent=0
    _
  %s5 = ssub.s32 1, %s3
  %s6 = scalar_select 0, %s5, %s3
  $region1: #{tpu_custom_call.1} parent=0
    #allocation2 [shape = 'u8[1024]{0}', space=vmem, size = 0x400, scoped, tag = 'input window, operand 0, single buffered']
    #allocation3 [shape = 's32[1]{0}', space=sflag, size = 0x4, scoped, tag = 'scoped memory for tpu_custom_call.1']
    #allocation4 [shape = 's32[1]{0}', space=sflag, size = 0x4, scoped, tag = 'scoped memory for tpu_custom_call.1']
    #allocation5 [shape = 'u8[1024]{0}', space=vmem, size = 0x400, scoped, tag = 'input window, operand 1, single buffered']
    #allocation6 [shape = 's32[1]{0}', space=sflag, size = 0x4, scoped, tag = 'scoped memory for tpu_custom_call.1']
    #allocation7 [shape = 'u8[512]{0}', space=vmem, size = 0x400, scoped, tag = 'output window, operand 0, single buffered']
    %7 = vsyncpa [#allocation3], 0
    %8 = vsyncpa [#allocation6], 0
    %9 = vsyncpa [#allocation4], 0
    // Predicated region
    $region2: #{tpu_custom_call.1} parent=1 // pred_check
      _
    $region3: #{tpu_custom_call.1} parent=1 // pred_check_branch
      %11 = sbr.rel (0) target = $region5
    $region4: #{tpu_custom_call.1} parent=1 // pred_region
      %s13 = ssub.s32 32, 32
      %14 = vsyncadd [#allocation3], %s13
      %s16 = sshll.u32 [#allocation2], 4
      %s17 = int_to_ptr.vmem [resolvable:$true] %s16
      %19 = dma.hbm_to_vmem [thread:$0]  %s0, 32, %s17, [#allocation3]
    $region5: #{tpu_custom_call.1} parent=1 // pred_fallthru
      _
    // Predicated region
    $region6: #{tpu_custom_call.1} parent=1 // pred_check
      _
    $region7: #{tpu_custom_call.1} parent=1 // pred_check_branch
      %21 = sbr.rel (0) target = $region9
    $region8: #{tpu_custom_call.1} parent=1 // pred_region
      %s23 = ssub.s32 32, 32
      %24 = vsyncadd [#allocation6], %s23
      %s26 = sshll.u32 [#allocation5], 4
      %s27 = int_to_ptr.vmem [resolvable:$true] %s26
      %29 = dma.hbm_to_vmem [thread:$0]  %s1, 32, %s27, [#allocation6]
    $region9: #{tpu_custom_call.1} parent=1 // pred_fallthru
      _
    // Predicated region
    $region10: #{tpu_custom_call.1} parent=1 // pred_check
      _
    $region11: #{tpu_custom_call.1} parent=1 // pred_check_branch
      %31 = sbr.rel (0) target = $region13
    $region12: #{tpu_custom_call.1} parent=1 // pred_region
      %32 = dma.done [#allocation3], 32
    $region13: #{tpu_custom_call.1} parent=1 // pred_fallthru
      _
    // Predicated region
    $region14: #{tpu_custom_call.1} parent=1 // pred_check
      _
    $region15: #{tpu_custom_call.1} parent=1 // pred_check_branch
      %34 = sbr.rel (0) target = $region17
    $region16: #{tpu_custom_call.1} parent=1 // pred_region
      %35 = dma.done [#allocation6], 32
    $region17: #{tpu_custom_call.1} parent=1 // pred_fallthru
      _
    %v36 = vld [vmem:[#allocation2] sm:$0x3]
    %v37 = vxor.u32 %v36, 2147483648
    %v38 = vmul.f32 %v37, 1.442695
    %v39 = vpow.pop %v38
    %v40 = vadd.f32 %v39, 1.0
    %v41 = vrcp.pop %v40
    %v42 = vmul.f32 1.0, %v41
    %v43 = vld [vmem:[#allocation5] sm:$0x3]
    %v44 = vmul.f32 %v42, %v43
    %vm45 = vcmask 1041408
    %v46 = vsel %vm45, %v44, 0.0
    %v47 = vrot.slane %v46, 4
    %v48 = vadd.f32 %v46, %v47
    %v49 = vrot.slane %v48, 2
    %v50 = vadd.f32 %v48, %v49
    %v51 = vrot.slane %v50, 1
    %v52 = vadd.f32 %v50, %v51
    %53 = vst [vmem:[#allocation7] sm:$0x1] %v52
    // Predicated region
    $region18: #{tpu_custom_call.1} parent=1 // pred_check
      _
    $region19: #{tpu_custom_call.1} parent=1 // pred_check_branch
      %55 = sbr.rel (0) target = $region21
    $region20: #{tpu_custom_call.1} parent=1 // pred_region
      %s57 = ssub.s32 16, 16
      %58 = vsyncadd [#allocation4], %s57
      %s60 = sshll.u32 [#allocation7], 4
      %s61 = int_to_ptr.vmem [resolvable:$true] %s60
      %63 = dma.vmem_to_hbm [thread:$0]  %s61, 16, %s2, [#allocation4]
    $region21: #{tpu_custom_call.1} parent=1 // pred_fallthru
      _
    // Predicated region
    $region22: #{tpu_custom_call.1} parent=1 // pred_check
      _
    $region23: #{tpu_custom_call.1} parent=1 // pred_check_branch
      %65 = sbr.rel (0) target = $region25
    $region24: #{tpu_custom_call.1} parent=1 // pred_region
      %66 = dma.done [#allocation4], 16
    $region25: #{tpu_custom_call.1} parent=1 // pred_fallthru
      _
    %67 = vsyncpa [#allocation3], 1
    %68 = vsyncpa [#allocation6], 1
    %69 = vsyncpa [#allocation4], 1

</llo_original>
